<compile_context>
chip_gen: v5e
topology: v5e:2x2
jax: 0.10.0
libtpu: 0.0.40
codegen_flags: <defaults>
</compile_context>

<pallas_src>
import functools

import jax
import jax.numpy as jnp
import numpy as np
from jax import lax
from jax.experimental import pallas as pl
from jax.experimental.pallas import tpu as pltpu


# -----------------------------------------------------------------------------
# Pallas kernel
# -----------------------------------------------------------------------------
def charrnn_kernel(
    x_ref,      # (T, TB, Ip)   f32   time-leading input, one batch tile
    h0_ref,     # (L, TB, Hp)   f32
    w0_ref,     # (Ip, Hp)      cdt   fused embedding + layer-0 input weight
    wih_ref,    # (L, Hp, Hp)   cdt   (layer-0 slot unused: folded into w0)
    b_ref,      # (L, 1, Hp)    f32   combined biases (layer 0 includes bemb@wih0)
    whh_ref,    # (L, Hp, Hp)   cdt
    wfc_ref,    # (Hp, Op)      cdt
    bfc_ref,    # (1, Op)       f32
    out_ref,    # (T, TB, Op)   f32
    hout_ref,   # (L, TB, Hp)   f32
    seq_ref,    # (T, TB, Hp)   f32 scratch: per-layer hidden sequence
    gates_ref,  # (T, TB, Hp)   f32 scratch: precomputed input gates
    *, num_layers, unroll,
):
    T, TB, Ip = x_ref.shape
    Hp = whh_ref.shape[-1]
    Op = wfc_ref.shape[-1]
    f32 = jnp.float32
    cdt = w0_ref.dtype  # matmul operand dtype (f32 or bf16), accumulation is f32

    # ---- layer-0 gates for the whole sequence: one bulk MXU matmul ----
    # (embedding Linear is folded into w0/b[0], so x feeds layer 0 directly)
    x2d = x_ref[...].reshape(T * TB, Ip).astype(cdt)
    gates_ref[...] = (
        jnp.dot(x2d, w0_ref[...], preferred_element_type=f32) + b_ref[0]
    ).reshape(T, TB, Hp)

    # ---- stacked tanh-RNN recurrence ----
    for l in range(num_layers):          # num_layers is tiny -> static Python loop
        if l > 0:
            # Gates for layer l from layer l-1's hidden sequence: one bulk matmul,
            # hoisted out of the timestep loop (cuDNN-style).
            seq2d = seq_ref[...].reshape(T * TB, Hp).astype(cdt)
            gates_ref[...] = (
                jnp.dot(seq2d, wih_ref[l], preferred_element_type=f32) + b_ref[l]
            ).reshape(T, TB, Hp)

        whh_l = whh_ref[l]               # hoisted: loaded once per layer

        def step(t, h, whh_l=whh_l):
            # Only work left on the serial dependency chain:
            #   h_t = tanh(gates[t] + h_{t-1} @ Whh)
            h = jnp.tanh(
                gates_ref[t]
                + jnp.dot(h.astype(cdt), whh_l, preferred_element_type=f32)
            )
            seq_ref[t] = h               # contiguous (TB, Hp) tile store
            return h

        h_last = lax.fori_loop(0, T, step, h0_ref[l].astype(f32), unroll=unroll)
        hout_ref[l] = h_last

    # ---- fc over the whole sequence: one bulk MXU matmul ----
    seq2d = seq_ref[...].reshape(T * TB, Hp).astype(cdt)
    out_ref[...] = (
        jnp.dot(seq2d, wfc_ref[...], preferred_element_type=f32) + bfc_ref[...]
    ).reshape(T, TB, Op)


# -----------------------------------------------------------------------------
# Wrapper (layout plumbing, padding, algebraic folds, grid setup)
# -----------------------------------------------------------------------------
def _round_up(n, m):
    return (n + m - 1) // m * m


def _batch_tile(bp):
    for tb in (128, 64, 32, 16, 8):
        if bp % tb == 0:
            return tb
    return bp


@functools.partial(jax.jit, static_argnames=("compute_dtype",))
def charrnn_forward(x, h0, params, compute_dtype="float32"):
    cdt = jnp.dtype(compute_dtype)
    f32 = jnp.float32

    B, T, I = x.shape
    L, _, H = h0.shape
    O = params["wfc"].shape[1]

    Ip = _round_up(I, 128)   # lane dim
    Hp = _round_up(H, 128)   # lane dim
    Op = _round_up(O, 128)   # lane dim
    Bp = _round_up(B, 8)     # sublane dim
    TB = _batch_tile(Bp)
    grid = (Bp // TB,)

    # ---- algebraic folds (in f32, so no extra rounding from the refactor) ----
    wemb, bemb = params["wemb"], params["bemb"]
    wih, bih = params["wih"], params["bih"]
    whh, bhh = params["whh"], params["bhh"]
    wfc, bfc = params["wfc"], params["bfc"]

    w0 = wemb @ wih[0]                       # (I, H)  embedding folded into layer 0
    b = bih + bhh                            # (L, 1, H) combined recurrence biases
    b = b.at[0].add(bemb @ wih[0])           # layer 0 also absorbs the embedding bias

    # ---- layout plumbing in the wrapper: time-leading + zero padding ----------
    x_p = jnp.pad(jnp.transpose(x, (1, 0, 2)).astype(f32),
                  ((0, 0), (0, Bp - B), (0, Ip - I)))            # (T, Bp, Ip)
    h0_p = jnp.pad(h0.astype(f32), ((0, 0), (0, Bp - B), (0, Hp - H)))
    w0_p = jnp.pad(w0, ((0, Ip - I), (0, Hp - H))).astype(cdt)
    wih_p = jnp.pad(wih, ((0, 0), (0, Hp - H), (0, Hp - H))).astype(cdt)
    whh_p = jnp.pad(whh, ((0, 0), (0, Hp - H), (0, Hp - H))).astype(cdt)
    b_p = jnp.pad(b, ((0, 0), (0, 0), (0, Hp - H))).astype(f32)
    wfc_p = jnp.pad(wfc, ((0, Hp - H), (0, Op - O))).astype(cdt)
    bfc_p = jnp.pad(bfc, ((0, 0), (0, Op - O))).astype(f32)

    # ---- explicit VMEM budget (keeps the kernel portable to v7x's 64 MiB) -----
    def nbytes(shape, dt):
        return int(np.prod(shape)) * jnp.dtype(dt).itemsize

    io_bytes = (
        nbytes((T, TB, Ip), f32) + nbytes((L, TB, Hp), f32)
        + nbytes((Ip, Hp), cdt) + 2 * nbytes((L, Hp, Hp), cdt)
        + nbytes((L, 1, Hp), f32) + nbytes((Hp, Op), cdt) + nbytes((1, Op), f32)
        + nbytes((T, TB, Op), f32) + nbytes((L, TB, Hp), f32)
    )
    scratch_bytes = 2 * nbytes((T, TB, Hp), f32)
    vmem_limit = int(min(128 << 20,
                         max(32 << 20, 2 * io_bytes + scratch_bytes + (8 << 20))))

    unroll = True if T <= 16 else 4

    kernel = functools.partial(charrnn_kernel, num_layers=L, unroll=unroll)

    out_p, hout_p = pl.pallas_call(
        kernel,
        grid=grid,
        in_specs=[
            pl.BlockSpec((T, TB, Ip), lambda bi: (0, bi, 0)),   # x (batch-tiled)
            pl.BlockSpec((L, TB, Hp), lambda bi: (0, bi, 0)),   # h0
            pl.BlockSpec((Ip, Hp), lambda bi: (0, 0)),          # w0 (fused)
            pl.BlockSpec((L, Hp, Hp), lambda bi: (0, 0, 0)),    # wih
            pl.BlockSpec((L, 1, Hp), lambda bi: (0, 0, 0)),     # combined biases
            pl.BlockSpec((L, Hp, Hp), lambda bi: (0, 0, 0)),    # whh
            pl.BlockSpec((Hp, Op), lambda bi: (0, 0)),          # wfc
            pl.BlockSpec((1, Op), lambda bi: (0, 0)),           # bfc
        ],
        out_specs=(
            pl.BlockSpec((T, TB, Op), lambda bi: (0, bi, 0)),   # output sequence
            pl.BlockSpec((L, TB, Hp), lambda bi: (0, bi, 0)),   # final hidden
        ),
        out_shape=(
            jax.ShapeDtypeStruct((T, Bp, Op), f32),
            jax.ShapeDtypeStruct((L, Bp, Hp), f32),
        ),
        scratch_shapes=[
            pltpu.VMEM((T, TB, Hp), f32),   # per-layer hidden sequence buffer
            pltpu.VMEM((T, TB, Hp), f32),   # precomputed gates buffer
        ],
        compiler_params=pltpu.CompilerParams(
            dimension_semantics=("parallel",),   # batch tiles are independent
            vmem_limit_bytes=vmem_limit,
        ),
    )(x_p, h0_p, w0_p, wih_p, b_p, whh_p, wfc_p, bfc_p)

    out = jnp.transpose(out_p[:, :B, :O], (1, 0, 2))   # (B, T, O) batch_first
    hout = hout_p[:, :B, :H]                           # (L, B, H)
    return out, hout


# -----------------------------------------------------------------------------
# Pure-JAX reference (mirrors PyTorch CharRNN.forward semantics, unfused)
# -----------------------------------------------------------------------------
def charrnn_reference(x, h0, params):
    L = h0.shape[0]
    T = x.shape[1]
    emb = x @ params["wemb"] + params["bemb"]          # (B, T, H)
    layer_in = emb
    h_finals = []
    for l in range(L):
        h = h0[l]
        outs = []
        for t in range(T):
            h = jnp.tanh(
                layer_in[:, t] @ params["wih"][l] + params["bih"][l][0]
                + h @ params["whh"][l] + params["bhh"][l][0]
            )
            outs.append(h)
        layer_in = jnp.stack(outs, axis=1)
        h_finals.append(h)
    out = layer_in @ params["wfc"] + params["bfc"]     # (B, T, O)
    return out, jnp.stack(h_finals, axis=0)


# -----------------------------------------------------------------------------
# Deterministic parameter init (PyTorch-style uniform(-1/sqrt(fan_in), +))
# -----------------------------------------------------------------------------
def init_params(key, input_size, hidden_size, output_size, num_layers):
    ks = jax.random.split(key, 8)

    def u(k, shape, fan_in):
        bound = 1.0 / np.sqrt(fan_in)
        return jax.random.uniform(k, shape, jnp.float32, -bound, bound)

    I, H, O, L = input_size, hidden_size, output_size, num_layers
    return {
        "wemb": u(ks[0], (I, H), I),       # embedding Linear(I->H), transposed
        "bemb": u(ks[1], (1, H), I),
        "wih": u(ks[2], (L, H, H), H),     # RNN input->hidden, transposed
        "bih": u(ks[3], (L, 1, H), H),
        "whh": u(ks[4], (L, H, H), H),     # RNN hidden->hidden, transposed
        "bhh": u(ks[5], (L, 1, H), H),
        "wfc": u(ks[6], (H, O), H),        # fc Linear(H->O), transposed
        "bfc": u(ks[7], (1, O), H),
    }


if __name__ == "__main__":
    input_size, hidden_size, output_size = 16, 32, 16
    batch, seq = 2, 8

    key = jax.random.PRNGKey(0)
    kx, kp = jax.random.split(key)
    x = jax.random.normal(kx, (batch, seq, input_size), dtype=jnp.float32)

    # ---- single-layer config, f32 weights (exact semantics check) ----
    num_layers = 1
    h0 = jnp.zeros((num_layers, batch, hidden_size), dtype=jnp.float32)
    params = init_params(kp, input_size, hidden_size, output_size, num_layers)
    ref_out, ref_hout = charrnn_reference(x, h0, params)

    out, hout = charrnn_forward(x, h0, params, compute_dtype="float32")
    out, hout = jax.block_until_ready(out), jax.block_until_ready(hout)
    assert out.shape == (batch, seq, output_size)
    assert hout.shape == (num_layers, batch, hidden_size)
    assert np.allclose(np.asarray(out), np.asarray(ref_out), atol=1e-4, rtol=1e-4)
    assert np.allclose(np.asarray(hout), np.asarray(ref_hout), atol=1e-4, rtol=1e-4)

    # ---- bf16-weight path (v6e/v7x MXU rate; f32 accumulation) ----
    out_bf, hout_bf = charrnn_forward(x, h0, params, compute_dtype="bfloat16")
    out_bf, hout_bf = jax.block_until_ready(out_bf), jax.block_until_ready(hout_bf)
    assert np.allclose(np.asarray(out_bf), np.asarray(ref_out), atol=5e-2, rtol=5e-2)
    assert np.allclose(np.asarray(hout_bf), np.asarray(ref_hout), atol=5e-2, rtol=5e-2)

    # ---- two-layer config, f32 (exercises the stacked-layer path) ----
    num_layers = 2
    h0_2 = jnp.zeros((num_layers, batch, hidden_size), dtype=jnp.float32)
    params_2 = init_params(kp, input_size, hidden_size, output_size, num_layers)
    ref_out2, ref_hout2 = charrnn_reference(x, h0_2, params_2)
    out2, hout2 = charrnn_forward(x, h0_2, params_2, compute_dtype="float32")
    out2, hout2 = jax.block_until_ready(out2), jax.block_until_ready(hout2)
    assert np.allclose(np.asarray(out2), np.asarray(ref_out2), atol=1e-4, rtol=1e-4)
    assert np.allclose(np.asarray(hout2), np.asarray(ref_hout2), atol=1e-4, rtol=1e-4)

    print("KERNEL_OK")
</pallas_src>

<mosaic_0001>
module attributes {stable_mosaic.version = 11 : i64} {
  func.func @charrnn_kernel(%arg0: i32, %arg1: memref<8x8x128xf32, #tpu.memory_space<vmem>>, %arg2: memref<1x8x128xf32, #tpu.memory_space<vmem>>, %arg3: memref<128x128xf32, #tpu.memory_space<vmem>>, %arg4: memref<1x128x128xf32, #tpu.memory_space<vmem>>, %arg5: memref<1x1x128xf32, #tpu.memory_space<vmem>>, %arg6: memref<1x128x128xf32, #tpu.memory_space<vmem>>, %arg7: memref<128x128xf32, #tpu.memory_space<vmem>>, %arg8: memref<1x128xf32, #tpu.memory_space<vmem>>, %arg9: memref<8x8x128xf32, #tpu.memory_space<vmem>>, %arg10: memref<1x8x128xf32, #tpu.memory_space<vmem>>, %arg11: memref<8x8x128xf32, #tpu.memory_space<vmem>>, %arg12: memref<8x8x128xf32, #tpu.memory_space<vmem>>) attributes {dimension_semantics = [#tpu.dimension_semantics<parallel>], iteration_bounds = array<i64: 1>, scalar_prefetch = 0 : i64, scratch_operands = 2 : i64, tpu.core_type = #tpu.core_type<tc>, window_params = [{transform_indices = @transform_0, window_bounds = array<i64: 8, 8, 128>}, {transform_indices = @transform_1, window_bounds = array<i64: 1, 8, 128>}, {pipeline_mode = #tpu.pipeline_mode<synchronous>, transform_indices = @transform_2, window_bounds = array<i64: 128, 128>}, {pipeline_mode = #tpu.pipeline_mode<synchronous>, transform_indices = @transform_3, window_bounds = array<i64: 1, 128, 128>}, {pipeline_mode = #tpu.pipeline_mode<synchronous>, transform_indices = @transform_4, window_bounds = array<i64: 1, 1, 128>}, {pipeline_mode = #tpu.pipeline_mode<synchronous>, transform_indices = @transform_5, window_bounds = array<i64: 1, 128, 128>}, {pipeline_mode = #tpu.pipeline_mode<synchronous>, transform_indices = @transform_6, window_bounds = array<i64: 128, 128>}, {pipeline_mode = #tpu.pipeline_mode<synchronous>, transform_indices = @transform_7, window_bounds = array<i64: 1, 128>}, {transform_indices = @transform_8, window_bounds = array<i64: 8, 8, 128>}, {transform_indices = @transform_9, window_bounds = array<i64: 1, 8, 128>}]} {
    %c0 = arith.constant 0 : index
    %c0_0 = arith.constant 0 : index
    %c0_1 = arith.constant 0 : index
    %0 = vector.load %arg1[%c0, %c0_0, %c0_1] : memref<8x8x128xf32, #tpu.memory_space<vmem>>, vector<8x8x128xf32>
    %1 = vector.shape_cast %0 : vector<8x8x128xf32> to vector<64x128xf32>
    %c0_2 = arith.constant 0 : index
    %c0_3 = arith.constant 0 : index
    %2 = vector.load %arg3[%c0_2, %c0_3] : memref<128x128xf32, #tpu.memory_space<vmem>>, vector<128x128xf32>
    %cst = arith.constant dense<0.000000e+00> : vector<64x128xf32>
    %3 = tpu.matmul %1, %2, %cst {dimension_numbers = #tpu.dot_dimension_numbers<[1], [0], [0], [1], [0, 0, 1, 1], [], []>} : vector<64x128xf32>, vector<128x128xf32>, vector<64x128xf32> -> vector<64x128xf32>
    %c0_4 = arith.constant 0 : index
    %c0_5 = arith.constant 0 : index
    %c0_6 = arith.constant 0 : index
    %4 = vector.load %arg5[%c0_4, %c0_5, %c0_6] : memref<1x1x128xf32, #tpu.memory_space<vmem>>, vector<1x1x128xf32>
    %5 = vector.shape_cast %4 : vector<1x1x128xf32> to vector<1x128xf32>
    %6 = vector.broadcast %5 : vector<1x128xf32> to vector<64x128xf32>
    %7 = arith.addf %3, %6 : vector<64x128xf32>
    %8 = vector.shape_cast %7 : vector<64x128xf32> to vector<8x8x128xf32>
    %c0_7 = arith.constant 0 : index
    %c0_8 = arith.constant 0 : index
    %c0_9 = arith.constant 0 : index
    %9 = vector.load %arg12[%c0_7, %c0_8, %c0_9] : memref<8x8x128xf32, #tpu.memory_space<vmem>>, vector<8x8x128xf32>
    tpu.vector_store %arg12[%c0_7, %c0_8, %c0_9], %8 {strides = array<i32>} : memref<8x8x128xf32, #tpu.memory_space<vmem>>, vector<8x8x128xf32>,
    %c0_10 = arith.constant 0 : index
    %c0_11 = arith.constant 0 : index
    %c0_12 = arith.constant 0 : index
    %10 = vector.load %arg6[%c0_10, %c0_11, %c0_12] : memref<1x128x128xf32, #tpu.memory_space<vmem>>, vector<1x128x128xf32>
    %11 = vector.shape_cast %10 : vector<1x128x128xf32> to vector<128x128xf32>
    %c0_13 = arith.constant 0 : index
    %c0_14 = arith.constant 0 : index
    %c0_15 = arith.constant 0 : index
    %12 = vector.load %arg2[%c0_13, %c0_14, %c0_15] : memref<1x8x128xf32, #tpu.memory_space<vmem>>, vector<1x8x128xf32>
    %13 = vector.shape_cast %12 : vector<1x8x128xf32> to vector<8x128xf32>
    %c0_i32 = arith.constant 0 : i32
    %14 = arith.index_cast %c0_i32 : i32 to index
    %c0_16 = arith.constant 0 : index
    %c0_17 = arith.constant 0 : index
    %15 = vector.load %arg12[%14, %c0_16, %c0_17] : memref<8x8x128xf32, #tpu.memory_space<vmem>>, vector<1x8x128xf32>
    %16 = vector.shape_cast %15 : vector<1x8x128xf32> to vector<8x128xf32>
    %cst_18 = arith.constant dense<0.000000e+00> : vector<8x128xf32>
    %17 = tpu.matmul %13, %11, %cst_18 {dimension_numbers = #tpu.dot_dimension_numbers<[1], [0], [0], [1], [0, 0, 1, 1], [], []>} : vector<8x128xf32>, vector<128x128xf32>, vector<8x128xf32> -> vector<8x128xf32>
    %18 = arith.addf %16, %17 : vector<8x128xf32>
    %19 = math.tanh %18 : vector<8x128xf32>
    %20 = arith.index_cast %c0_i32 : i32 to index
    %c0_19 = arith.constant 0 : index
    %c0_20 = arith.constant 0 : index
    %21 = vector.load %arg11[%20, %c0_19, %c0_20] : memref<8x8x128xf32, #tpu.memory_space<vmem>>, vector<1x8x128xf32>
    %22 = vector.shape_cast %21 : vector<1x8x128xf32> to vector<8x128xf32>
    %23 = vector.shape_cast %19 : vector<8x128xf32> to vector<1x8x128xf32>
    tpu.vector_store %arg11[%20, %c0_19, %c0_20], %23 {strides = array<i32>} : memref<8x8x128xf32, #tpu.memory_space<vmem>>, vector<1x8x128xf32>,
    %c1_i32 = arith.constant 1 : i32
    %24 = arith.index_cast %c1_i32 : i32 to index
    %c0_21 = arith.constant 0 : index
    %c0_22 = arith.constant 0 : index
    %25 = vector.load %arg12[%24, %c0_21, %c0_22] : memref<8x8x128xf32, #tpu.memory_space<vmem>>, vector<1x8x128xf32>
    %26 = vector.shape_cast %25 : vector<1x8x128xf32> to vector<8x128xf32>
    %cst_23 = arith.constant dense<0.000000e+00> : vector<8x128xf32>
    %27 = tpu.matmul %19, %11, %cst_23 {dimension_numbers = #tpu.dot_dimension_numbers<[1], [0], [0], [1], [0, 0, 1, 1], [], []>} : vector<8x128xf32>, vector<128x128xf32>, vector<8x128xf32> -> vector<8x128xf32>
    %28 = arith.addf %26, %27 : vector<8x128xf32>
    %29 = math.tanh %28 : vector<8x128xf32>
    %30 = arith.index_cast %c1_i32 : i32 to index
    %c0_24 = arith.constant 0 : index
    %c0_25 = arith.constant 0 : index
    %31 = vector.load %arg11[%30, %c0_24, %c0_25] : memref<8x8x128xf32, #tpu.memory_space<vmem>>, vector<1x8x128xf32>
    %32 = vector.shape_cast %31 : vector<1x8x128xf32> to vector<8x128xf32>
    %33 = vector.shape_cast %29 : vector<8x128xf32> to vector<1x8x128xf32>
    tpu.vector_store %arg11[%30, %c0_24, %c0_25], %33 {strides = array<i32>} : memref<8x8x128xf32, #tpu.memory_space<vmem>>, vector<1x8x128xf32>,
    %c2_i32 = arith.constant 2 : i32
    %34 = arith.index_cast %c2_i32 : i32 to index
    %c0_26 = arith.constant 0 : index
    %c0_27 = arith.constant 0 : index
    %35 = vector.load %arg12[%34, %c0_26, %c0_27] : memref<8x8x128xf32, #tpu.memory_space<vmem>>, vector<1x8x128xf32>
    %36 = vector.shape_cast %35 : vector<1x8x128xf32> to vector<8x128xf32>
    %cst_28 = arith.constant dense<0.000000e+00> : vector<8x128xf32>
    %37 = tpu.matmul %29, %11, %cst_28 {dimension_numbers = #tpu.dot_dimension_numbers<[1], [0], [0], [1], [0, 0, 1, 1], [], []>} : vector<8x128xf32>, vector<128x128xf32>, vector<8x128xf32> -> vector<8x128xf32>
    %38 = arith.addf %36, %37 : vector<8x128xf32>
    %39 = math.tanh %38 : vector<8x128xf32>
    %40 = arith.index_cast %c2_i32 : i32 to index
    %c0_29 = arith.constant 0 : index
    %c0_30 = arith.constant 0 : index
    %41 = vector.load %arg11[%40, %c0_29, %c0_30] : memref<8x8x128xf32, #tpu.memory_space<vmem>>, vector<1x8x128xf32>
    %42 = vector.shape_cast %41 : vector<1x8x128xf32> to vector<8x128xf32>
    %43 = vector.shape_cast %39 : vector<8x128xf32> to vector<1x8x128xf32>
    tpu.vector_store %arg11[%40, %c0_29, %c0_30], %43 {strides = array<i32>} : memref<8x8x128xf32, #tpu.memory_space<vmem>>, vector<1x8x128xf32>,
    %c3_i32 = arith.constant 3 : i32
    %44 = arith.index_cast %c3_i32 : i32 to index
    %c0_31 = arith.constant 0 : index
    %c0_32 = arith.constant 0 : index
    %45 = vector.load %arg12[%44, %c0_31, %c0_32] : memref<8x8x128xf32, #tpu.memory_space<vmem>>, vector<1x8x128xf32>
    %46 = vector.shape_cast %45 : vector<1x8x128xf32> to vector<8x128xf32>
    %cst_33 = arith.constant dense<0.000000e+00> : vector<8x128xf32>
    %47 = tpu.matmul %39, %11, %cst_33 {dimension_numbers = #tpu.dot_dimension_numbers<[1], [0], [0], [1], [0, 0, 1, 1], [], []>} : vector<8x128xf32>, vector<128x128xf32>, vector<8x128xf32> -> vector<8x128xf32>
    %48 = arith.addf %46, %47 : vector<8x128xf32>
    %49 = math.tanh %48 : vector<8x128xf32>
    %50 = arith.index_cast %c3_i32 : i32 to index
    %c0_34 = arith.constant 0 : index
    %c0_35 = arith.constant 0 : index
    %51 = vector.load %arg11[%50, %c0_34, %c0_35] : memref<8x8x128xf32, #tpu.memory_space<vmem>>, vector<1x8x128xf32>
    %52 = vector.shape_cast %51 : vector<1x8x128xf32> to vector<8x128xf32>
    %53 = vector.shape_cast %49 : vector<8x128xf32> to vector<1x8x128xf32>
    tpu.vector_store %arg11[%50, %c0_34, %c0_35], %53 {strides = array<i32>} : memref<8x8x128xf32, #tpu.memory_space<vmem>>, vector<1x8x128xf32>,
    %c4_i32 = arith.constant 4 : i32
    %54 = arith.index_cast %c4_i32 : i32 to index
    %c0_36 = arith.constant 0 : index
    %c0_37 = arith.constant 0 : index
    %55 = vector.load %arg12[%54, %c0_36, %c0_37] : memref<8x8x128xf32, #tpu.memory_space<vmem>>, vector<1x8x128xf32>
    %56 = vector.shape_cast %55 : vector<1x8x128xf32> to vector<8x128xf32>
    %cst_38 = arith.constant dense<0.000000e+00> : vector<8x128xf32>
    %57 = tpu.matmul %49, %11, %cst_38 {dimension_numbers = #tpu.dot_dimension_numbers<[1], [0], [0], [1], [0, 0, 1, 1], [], []>} : vector<8x128xf32>, vector<128x128xf32>, vector<8x128xf32> -> vector<8x128xf32>
    %58 = arith.addf %56, %57 : vector<8x128xf32>
    %59 = math.tanh %58 : vector<8x128xf32>
    %60 = arith.index_cast %c4_i32 : i32 to index
    %c0_39 = arith.constant 0 : index
    %c0_40 = arith.constant 0 : index
    %61 = vector.load %arg11[%60, %c0_39, %c0_40] : memref<8x8x128xf32, #tpu.memory_space<vmem>>, vector<1x8x128xf32>
    %62 = vector.shape_cast %61 : vector<1x8x128xf32> to vector<8x128xf32>
    %63 = vector.shape_cast %59 : vector<8x128xf32> to vector<1x8x128xf32>
    tpu.vector_store %arg11[%60, %c0_39, %c0_40], %63 {strides = array<i32>} : memref<8x8x128xf32, #tpu.memory_space<vmem>>, vector<1x8x128xf32>,
    %c5_i32 = arith.constant 5 : i32
    %64 = arith.index_cast %c5_i32 : i32 to index
    %c0_41 = arith.constant 0 : index
    %c0_42 = arith.constant 0 : index
    %65 = vector.load %arg12[%64, %c0_41, %c0_42] : memref<8x8x128xf32, #tpu.memory_space<vmem>>, vector<1x8x128xf32>
    %66 = vector.shape_cast %65 : vector<1x8x128xf32> to vector<8x128xf32>
    %cst_43 = arith.constant dense<0.000000e+00> : vector<8x128xf32>
    %67 = tpu.matmul %59, %11, %cst_43 {dimension_numbers = #tpu.dot_dimension_numbers<[1], [0], [0], [1], [0, 0, 1, 1], [], []>} : vector<8x128xf32>, vector<128x128xf32>, vector<8x128xf32> -> vector<8x128xf32>
    %68 = arith.addf %66, %67 : vector<8x128xf32>
    %69 = math.tanh %68 : vector<8x128xf32>
    %70 = arith.index_cast %c5_i32 : i32 to index
    %c0_44 = arith.constant 0 : index
    %c0_45 = arith.constant 0 : index
    %71 = vector.load %arg11[%70, %c0_44, %c0_45] : memref<8x8x128xf32, #tpu.memory_space<vmem>>, vector<1x8x128xf32>
    %72 = vector.shape_cast %71 : vector<1x8x128xf32> to vector<8x128xf32>
    %73 = vector.shape_cast %69 : vector<8x128xf32> to vector<1x8x128xf32>
    tpu.vector_store %arg11[%70, %c0_44, %c0_45], %73 {strides = array<i32>} : memref<8x8x128xf32, #tpu.memory_space<vmem>>, vector<1x8x128xf32>,
    %c6_i32 = arith.constant 6 : i32
    %74 = arith.index_cast %c6_i32 : i32 to index
    %c0_46 = arith.constant 0 : index
    %c0_47 = arith.constant 0 : index
    %75 = vector.load %arg12[%74, %c0_46, %c0_47] : memref<8x8x128xf32, #tpu.memory_space<vmem>>, vector<1x8x128xf32>
    %76 = vector.shape_cast %75 : vector<1x8x128xf32> to vector<8x128xf32>
    %cst_48 = arith.constant dense<0.000000e+00> : vector<8x128xf32>
    %77 = tpu.matmul %69, %11, %cst_48 {dimension_numbers = #tpu.dot_dimension_numbers<[1], [0], [0], [1], [0, 0, 1, 1], [], []>} : vector<8x128xf32>, vector<128x128xf32>, vector<8x128xf32> -> vector<8x128xf32>
    %78 = arith.addf %76, %77 : vector<8x128xf32>
    %79 = math.tanh %78 : vector<8x128xf32>
    %80 = arith.index_cast %c6_i32 : i32 to index
    %c0_49 = arith.constant 0 : index
    %c0_50 = arith.constant 0 : index
    %81 = vector.load %arg11[%80, %c0_49, %c0_50] : memref<8x8x128xf32, #tpu.memory_space<vmem>>, vector<1x8x128xf32>
    %82 = vector.shape_cast %81 : vector<1x8x128xf32> to vector<8x128xf32>
    %83 = vector.shape_cast %79 : vector<8x128xf32> to vector<1x8x128xf32>
    tpu.vector_store %arg11[%80, %c0_49, %c0_50], %83 {strides = array<i32>} : memref<8x8x128xf32, #tpu.memory_space<vmem>>, vector<1x8x128xf32>,
    %c7_i32 = arith.constant 7 : i32
    %84 = arith.index_cast %c7_i32 : i32 to index
    %c0_51 = arith.constant 0 : index
    %c0_52 = arith.constant 0 : index
    %85 = vector.load %arg12[%84, %c0_51, %c0_52] : memref<8x8x128xf32, #tpu.memory_space<vmem>>, vector<1x8x128xf32>
    %86 = vector.shape_cast %85 : vector<1x8x128xf32> to vector<8x128xf32>
    %cst_53 = arith.constant dense<0.000000e+00> : vector<8x128xf32>
    %87 = tpu.matmul %79, %11, %cst_53 {dimension_numbers = #tpu.dot_dimension_numbers<[1], [0], [0], [1], [0, 0, 1, 1], [], []>} : vector<8x128xf32>, vector<128x128xf32>, vector<8x128xf32> -> vector<8x128xf32>
    %88 = arith.addf %86, %87 : vector<8x128xf32>
    %89 = math.tanh %88 : vector<8x128xf32>
    %90 = arith.index_cast %c7_i32 : i32 to index
    %c0_54 = arith.constant 0 : index
    %c0_55 = arith.constant 0 : index
    %91 = vector.load %arg11[%90, %c0_54, %c0_55] : memref<8x8x128xf32, #tpu.memory_space<vmem>>, vector<1x8x128xf32>
    %92 = vector.shape_cast %91 : vector<1x8x128xf32> to vector<8x128xf32>
    %93 = vector.shape_cast %89 : vector<8x128xf32> to vector<1x8x128xf32>
    tpu.vector_store %arg11[%90, %c0_54, %c0_55], %93 {strides = array<i32>} : memref<8x8x128xf32, #tpu.memory_space<vmem>>, vector<1x8x128xf32>,
    %c8_i32 = arith.constant 8 : i32
    %c0_56 = arith.constant 0 : index
    %c0_57 = arith.constant 0 : index
    %c0_58 = arith.constant 0 : index
    %94 = vector.load %arg10[%c0_56, %c0_57, %c0_58] : memref<1x8x128xf32, #tpu.memory_space<vmem>>, vector<1x8x128xf32>
    %95 = vector.shape_cast %94 : vector<1x8x128xf32> to vector<8x128xf32>
    %96 = vector.shape_cast %89 : vector<8x128xf32> to vector<1x8x128xf32>
    tpu.vector_store %arg10[%c0_56, %c0_57, %c0_58], %96 {strides = array<i32>} : memref<1x8x128xf32, #tpu.memory_space<vmem>>, vector<1x8x128xf32>,
    %c0_59 = arith.constant 0 : index
    %c0_60 = arith.constant 0 : index
    %c0_61 = arith.constant 0 : index
    %97 = vector.load %arg11[%c0_59, %c0_60, %c0_61] : memref<8x8x128xf32, #tpu.memory_space<vmem>>, vector<8x8x128xf32>
    %98 = vector.shape_cast %97 : vector<8x8x128xf32> to vector<64x128xf32>
    %c0_62 = arith.constant 0 : index
    %c0_63 = arith.constant 0 : index
    %99 = vector.load %arg7[%c0_62, %c0_63] : memref<128x128xf32, #tpu.memory_space<vmem>>, vector<128x128xf32>
    %cst_64 = arith.constant dense<0.000000e+00> : vector<64x128xf32>
    %100 = tpu.matmul %98, %99, %cst_64 {dimension_numbers = #tpu.dot_dimension_numbers<[1], [0], [0], [1], [0, 0, 1, 1], [], []>} : vector<64x128xf32>, vector<128x128xf32>, vector<64x128xf32> -> vector<64x128xf32>
    %c0_65 = arith.constant 0 : index
    %c0_66 = arith.constant 0 : index
    %101 = vector.load %arg8[%c0_65, %c0_66] : memref<1x128xf32, #tpu.memory_space<vmem>>, vector<1x128xf32>
    %102 = vector.broadcast %101 : vector<1x128xf32> to vector<64x128xf32>
    %103 = arith.addf %100, %102 : vector<64x128xf32>
    %104 = vector.shape_cast %103 : vector<64x128xf32> to vector<8x8x128xf32>
    %c0_67 = arith.constant 0 : index
    %c0_68 = arith.constant 0 : index
    %c0_69 = arith.constant 0 : index
    %105 = vector.load %arg9[%c0_67, %c0_68, %c0_69] : memref<8x8x128xf32, #tpu.memory_space<vmem>>, vector<8x8x128xf32>
    tpu.vector_store %arg9[%c0_67, %c0_68, %c0_69], %104 {strides = array<i32>} : memref<8x8x128xf32, #tpu.memory_space<vmem>>, vector<8x8x128xf32>,
    return
  }
  func.func @transform_0(%arg0: i32) -> (i32, i32, i32) {
    %c0_i32 = arith.constant 0 : i32
    %c0_i32_0 = arith.constant 0 : i32
    %c0_i32_1 = arith.constant 0 : i32
    return %c0_i32, %arg0, %c0_i32_0 : i32, i32, i32
  }
  func.func @transform_1(%arg0: i32) -> (i32, i32, i32) {
    %c0_i32 = arith.constant 0 : i32
    %c0_i32_0 = arith.constant 0 : i32
    %c0_i32_1 = arith.constant 0 : i32
    return %c0_i32, %arg0, %c0_i32_0 : i32, i32, i32
  }
  func.func @transform_2(%arg0: i32) -> (i32, i32) {
    %c0_i32 = arith.constant 0 : i32
    %c0_i32_0 = arith.constant 0 : i32
    %c0_i32_1 = arith.constant 0 : i32
    return %c0_i32, %c0_i32_0 : i32, i32
  }
  func.func @transform_3(%arg0: i32) -> (i32, i32, i32) {
    %c0_i32 = arith.constant 0 : i32
    %c0_i32_0 = arith.constant 0 : i32
    %c0_i32_1 = arith.constant 0 : i32
    %c0_i32_2 = arith.constant 0 : i32
    return %c0_i32, %c0_i32_0, %c0_i32_1 : i32, i32, i32
  }
  func.func @transform_4(%arg0: i32) -> (i32, i32, i32) {
    %c0_i32 = arith.constant 0 : i32
    %c0_i32_0 = arith.constant 0 : i32
    %c0_i32_1 = arith.constant 0 : i32
    %c0_i32_2 = arith.constant 0 : i32
    return %c0_i32, %c0_i32_0, %c0_i32_1 : i32, i32, i32
  }
  func.func @transform_5(%arg0: i32) -> (i32, i32, i32) {
    %c0_i32 = arith.constant 0 : i32
    %c0_i32_0 = arith.constant 0 : i32
    %c0_i32_1 = arith.constant 0 : i32
    %c0_i32_2 = arith.constant 0 : i32
    return %c0_i32, %c0_i32_0, %c0_i32_1 : i32, i32, i32
  }
  func.func @transform_6(%arg0: i32) -> (i32, i32) {
    %c0_i32 = arith.constant 0 : i32
    %c0_i32_0 = arith.constant 0 : i32
    %c0_i32_1 = arith.constant 0 : i32
    return %c0_i32, %c0_i32_0 : i32, i32
  }
  func.func @transform_7(%arg0: i32) -> (i32, i32) {
    %c0_i32 = arith.constant 0 : i32
    %c0_i32_0 = arith.constant 0 : i32
    %c0_i32_1 = arith.constant 0 : i32
    return %c0_i32, %c0_i32_0 : i32, i32
  }
  func.func @transform_8(%arg0: i32) -> (i32, i32, i32) {
    %c0_i32 = arith.constant 0 : i32
    %c0_i32_0 = arith.constant 0 : i32
    %c0_i32_1 = arith.constant 0 : i32
    return %c0_i32, %arg0, %c0_i32_0 : i32, i32, i32
  }
  func.func @transform_9(%arg0: i32) -> (i32, i32, i32) {
    %c0_i32 = arith.constant 0 : i32
    %c0_i32_0 = arith.constant 0 : i32
    %c0_i32_1 = arith.constant 0 : i32
    return %c0_i32, %arg0, %c0_i32_0 : i32, i32, i32
  }
}

</mosaic_0001>

<llo_original>
// kernel: charrnn_forward.1
$region0: #{charrnn_forward.1}
  #allocation0 [shape = 'u32[]', space=smem, size = 0x4, offset = 0x4, fixed_abs, tag = 'smem constant byte address 0x4 - core index']
  #allocation1 [shape = 'u32[72,128]{1,0:T(1,128)}', space=vmem, size = 0x9000, scoped, tag = 'internal scratch']
  #allocation2 [shape = 'f32[8,8,128]{2,1,0:T(8,128)}', space=vmem, size = 0x8000, scoped, tag = 'scratch operand']
  #allocation3 [shape = 'f32[8,8,128]{2,1,0:T(8,128)}', space=vmem, size = 0x8000, scoped, tag = 'scratch operand']
  %s0 = inlined_call_operand.vmem [shape: f32[8,8,128], index: 0, kind: input, shape index: {}]
  %s1 = inlined_call_operand.vmem [shape: f32[1,8,128], index: 1, kind: input, shape index: {}]
  %s2 = inlined_call_operand.vmem [shape: f32[128,128], index: 2, kind: input, shape index: {}]
  %s3 = inlined_call_operand.vmem [shape: f32[1,128,128], index: 3, kind: input, shape index: {}]
  %s4 = inlined_call_operand.vmem [shape: f32[1,1,128], index: 4, kind: input, shape index: {}]
  %s5 = inlined_call_operand.vmem [shape: f32[1,128,128], index: 5, kind: input, shape index: {}]
  %s6 = inlined_call_operand.vmem [shape: f32[128,128], index: 6, kind: input, shape index: {}]
  %s7 = inlined_call_operand.vmem [shape: f32[1,128], index: 7, kind: input, shape index: {}]
  %s8 = inlined_call_operand.vmem [shape: f32[8,8,128], index: 8, kind: output, shape index: {0}]
  %s9 = inlined_call_operand.vmem [shape: f32[1,8,128], index: 9, kind: output, shape index: {1}]
  %10 = xla_tuple %s8, %s9
  %s11 = sld [smem:[#allocation0]]
  $region50: #{charrnn_forward.1} parent=0
    _
  %s13 = ssub.s32 1, %s11
  %s14 = scalar_select 0, %s13, %s11
  // Predicated region
  $region2: #{charrnn_forward.1} parent=0 // pred_check
    _
  $region3: #{charrnn_forward.1} parent=0 // pred_check_branch
    %16 = sbr.rel (0) target = $region5
  $region4: #{charrnn_forward.1} parent=0 // pred_region
    _
  $region5: #{charrnn_forward.1} parent=0 // pred_fallthru
    _
  // Predicated region
  $region6: #{charrnn_forward.1} parent=0 // pred_check
    _
  $region7: #{charrnn_forward.1} parent=0 // pred_check_branch
    %18 = sbr.rel (0) target = $region9
  $region8: #{charrnn_forward.1} parent=0 // pred_region
    _
  $region9: #{charrnn_forward.1} parent=0 // pred_fallthru
    _
  // Predicated region
  $region10: #{charrnn_forward.1} parent=0 // pred_check
    _
  $region11: #{charrnn_forward.1} parent=0 // pred_check_branch
    %20 = sbr.rel (0) target = $region13
  $region12: #{charrnn_forward.1} parent=0 // pred_region
    _
  $region13: #{charrnn_forward.1} parent=0 // pred_fallthru
    _
  // Predicated region
  $region14: #{charrnn_forward.1} parent=0 // pred_check
    _
  $region15: #{charrnn_forward.1} parent=0 // pred_check_branch
    %22 = sbr.rel (0) target = $region17
  $region16: #{charrnn_forward.1} parent=0 // pred_region
    _
  $region17: #{charrnn_forward.1} parent=0 // pred_fallthru
    _
  // Predicated region
  $region18: #{charrnn_forward.1} parent=0 // pred_check
    _
  $region19: #{charrnn_forward.1} parent=0 // pred_check_branch
    %24 = sbr.rel (0) target = $region21
  $region20: #{charrnn_forward.1} parent=0 // pred_region
    _
  $region21: #{charrnn_forward.1} parent=0 // pred_fallthru
    _
  // Predicated region
  $region22: #{charrnn_forward.1} parent=0 // pred_check
    _
  $region23: #{charrnn_forward.1} parent=0 // pred_check_branch
    %26 = sbr.rel (0) target = $region25
  $region24: #{charrnn_forward.1} parent=0 // pred_region
    _
  $region25: #{charrnn_forward.1} parent=0 // pred_fallthru
    _
  // Predicated region
  $region26: #{charrnn_forward.1} parent=0 // pred_check
    _
  $region27: #{charrnn_forward.1} parent=0 // pred_check_branch
    %28 = sbr.rel (0) target = $region29
  $region28: #{charrnn_forward.1} parent=0 // pred_region
    _
  $region29: #{charrnn_forward.1} parent=0 // pred_fallthru
    _
  // Predicated region
  $region30: #{charrnn_forward.1} parent=0 // pred_check
    _
  $region31: #{charrnn_forward.1} parent=0 // pred_check_branch
    %30 = sbr.rel (0) target = $region33
  $region32: #{charrnn_forward.1} parent=0 // pred_region
    _
  $region33: #{charrnn_forward.1} parent=0 // pred_fallthru
    _
  %v31 = vld [vmem:[%s0] sm:$0xff]
  %v32 = vld [vmem:[%s0 + $0x8] sm:$0xff]
  %v33 = vld [vmem:[%s0 + $0x10] sm:$0xff]
  %v34 = vld [vmem:[%s0 + $0x18] sm:$0xff]
  %v35 = vld [vmem:[%s0 + $0x20] sm:$0xff]
  %v36 = vld [vmem:[%s0 + $0x28] sm:$0xff]
  %v37 = vld [vmem:[%s0 + $0x30] sm:$0xff]
  %v38 = vld [vmem:[%s0 + $0x38] sm:$0xff]
  %v39 = vld [vmem:[%s2] sm:$0xff]
  %v40 = vld [vmem:[%s2 + $0x8] sm:$0xff]
  %v41 = vld [vmem:[%s2 + $0x10] sm:$0xff]
  %v42 = vld [vmem:[%s2 + $0x18] sm:$0xff]
  %v43 = vld [vmem:[%s2 + $0x20] sm:$0xff]
  %v44 = vld [vmem:[%s2 + $0x28] sm:$0xff]
  %v45 = vld [vmem:[%s2 + $0x30] sm:$0xff]
  %v46 = vld [vmem:[%s2 + $0x38] sm:$0xff]
  %v47 = vld [vmem:[%s2 + $0x40] sm:$0xff]
  %v48 = vld [vmem:[%s2 + $0x48] sm:$0xff]
  %v49 = vld [vmem:[%s2 + $0x50] sm:$0xff]
  %v50 = vld [vmem:[%s2 + $0x58] sm:$0xff]
  %v51 = vld [vmem:[%s2 + $0x60] sm:$0xff]
  %v52 = vld [vmem:[%s2 + $0x68] sm:$0xff]
  %v53 = vld [vmem:[%s2 + $0x70] sm:$0xff]
  %v54 = vld [vmem:[%s2 + $0x78] sm:$0xff]
  %v55 = vld [vmem:[%s4] sm:$0x1]
  %v57 = vperm.slane %v55, 0
  %59 = vmatpush.msra.mxu0 %v54
  %60 = vmatpush.msra.mxu0 %v53
  %61 = vmatpush.msra.mxu0 %v52
  %62 = vmatpush.msra.mxu0 %v51
  %63 = vmatpush.msra.mxu0 %v50
  %64 = vmatpush.msra.mxu0 %v49
  %65 = vmatpush.msra.mxu0 %v48
  %66 = vmatpush.msra.mxu0 %v47
  %67 = vmatpush.msra.mxu0 %v46
  %68 = vmatpush.msra.mxu0 %v45
  %69 = vmatpush.msra.mxu0 %v44
  %70 = vmatpush.msra.mxu0 %v43
  %71 = vmatpush.msra.mxu0 %v42
  %72 = vmatpush.msra.mxu0 %v41
  %73 = vmatpush.msra.mxu0 %v40
  %74 = vmatpush.msra.mxu0 %v39
  %75 = vmatmul.f32.gmra.mxu0 %v31
  %v76 = vpop.f32.mrf.mxu0
  %v77 = vadd.f32 %v57, %v76
  %78 = vmatmul.f32.gmra.mxu0 %v32
  %v79 = vpop.f32.mrf.mxu0
  %v80 = vadd.f32 %v57, %v79
  %81 = vmatmul.f32.gmra.mxu0 %v33
  %v82 = vpop.f32.mrf.mxu0
  %v83 = vadd.f32 %v57, %v82
  %84 = vmatmul.f32.gmra.mxu0 %v34
  %v85 = vpop.f32.mrf.mxu0
  %v86 = vadd.f32 %v57, %v85
  %87 = vmatmul.f32.gmra.mxu0 %v35
  %v88 = vpop.f32.mrf.mxu0
  %v89 = vadd.f32 %v57, %v88
  %90 = vmatmul.f32.gmra.mxu0 %v36
  %v91 = vpop.f32.mrf.mxu0
  %v92 = vadd.f32 %v57, %v91
  %93 = vmatmul.f32.gmra.mxu0 %v37
  %v94 = vpop.f32.mrf.mxu0
  %v95 = vadd.f32 %v57, %v94
  %96 = vmatmul.f32.gmra.mxu0 %v38
  %v97 = vpop.f32.mrf.mxu0
  %v98 = vadd.f32 %v57, %v97
  %99 = vdwg.mxu0
  %100 = vst [vmem:[#allocation3] sm:$0xff] %v77
  %101 = vst [vmem:[#allocation3 + $0x8] sm:$0xff] %v80
  %102 = vst [vmem:[#allocation3 + $0x10] sm:$0xff] %v83
  %103 = vst [vmem:[#allocation3 + $0x18] sm:$0xff] %v86
  %104 = vst [vmem:[#allocation3 + $0x20] sm:$0xff] %v89
  %105 = vst [vmem:[#allocation3 + $0x28] sm:$0xff] %v92
  %106 = vst [vmem:[#allocation3 + $0x30] sm:$0xff] %v95
  %107 = vst [vmem:[#allocation3 + $0x38] sm:$0xff] %v98
  %v108 = vld [vmem:[%s5] sm:$0xff]
  %v109 = vld [vmem:[%s5 + $0x8] sm:$0xff]
  %v110 = vld [vmem:[%s5 + $0x10] sm:$0xff]
  %v111 = vld [vmem:[%s5 + $0x18] sm:$0xff]
  %v112 = vld [vmem:[%s5 + $0x20] sm:$0xff]
  %v113 = vld [vmem:[%s5 + $0x28] sm:$0xff]
  %v114 = vld [vmem:[%s5 + $0x30] sm:$0xff]
  %v115 = vld [vmem:[%s5 + $0x38] sm:$0xff]
  %v116 = vld [vmem:[%s5 + $0x40] sm:$0xff]
  %v117 = vld [vmem:[%s5 + $0x48] sm:$0xff]
  %v118 = vld [vmem:[%s5 + $0x50] sm:$0xff]
  %v119 = vld [vmem:[%s5 + $0x58] sm:$0xff]
  %v120 = vld [vmem:[%s5 + $0x60] sm:$0xff]
  %v121 = vld [vmem:[%s5 + $0x68] sm:$0xff]
  %v122 = vld [vmem:[%s5 + $0x70] sm:$0xff]
  %v123 = vld [vmem:[%s5 + $0x78] sm:$0xff]
  %v124 = vld [vmem:[%s1] sm:$0xff]
  %v125 = vld [vmem:[#allocation3] sm:$0xff]
  %126 = vmatpush.msra.mxu0 %v123
  %127 = vmatpush.msra.mxu0 %v122
  %128 = vmatpush.msra.mxu0 %v121
  %129 = vmatpush.msra.mxu0 %v120
  %130 = vmatpush.msra.mxu0 %v119
  %131 = vmatpush.msra.mxu0 %v118
  %132 = vmatpush.msra.mxu0 %v117
  %133 = vmatpush.msra.mxu0 %v116
  %134 = vmatpush.msra.mxu0 %v115
  %135 = vmatpush.msra.mxu0 %v114
  %136 = vmatpush.msra.mxu0 %v113
  %137 = vmatpush.msra.mxu0 %v112
  %138 = vmatpush.msra.mxu0 %v111
  %139 = vmatpush.msra.mxu0 %v110
  %140 = vmatpush.msra.mxu0 %v109
  %141 = vmatpush.msra.mxu0 %v108
  %142 = vmatmul.f32.gmra.mxu0 %v124
  %v143 = vpop.f32.mrf.mxu0
  %v144 = vadd.f32 0.0, %v143
  %145 = vdwg.mxu0
  %v146 = vadd.f32 %v125, %v144
  %v147 = vtanh.pop %v146
  %148 = vst [vmem:[#allocation2] sm:$0xff] %v147
  %s149 = scalar_lea.vmem [#allocation3], 8
  %v150 = vld [vmem:[%s149] sm:$0xff]
  %151 = vmatpush.msra.mxu0 %v123
  %152 = vmatpush.msra.mxu0 %v122
  %153 = vmatpush.msra.mxu0 %v121
  %154 = vmatpush.msra.mxu0 %v120
  %155 = vmatpush.msra.mxu0 %v119
  %156 = vmatpush.msra.mxu0 %v118
  %157 = vmatpush.msra.mxu0 %v117
  %158 = vmatpush.msra.mxu0 %v116
  %159 = vmatpush.msra.mxu0 %v115
  %160 = vmatpush.msra.mxu0 %v114
  %161 = vmatpush.msra.mxu0 %v113
  %162 = vmatpush.msra.mxu0 %v112
  %163 = vmatpush.msra.mxu0 %v111
  %164 = vmatpush.msra.mxu0 %v110
  %165 = vmatpush.msra.mxu0 %v109
  %166 = vmatpush.msra.mxu0 %v108
  %167 = vmatmul.f32.gmra.mxu0 %v147
  %v168 = vpop.f32.mrf.mxu0
  %v169 = vadd.f32 0.0, %v168
  %170 = vdwg.mxu0
  %v171 = vadd.f32 %v150, %v169
  %v172 = vtanh.pop %v171
  %s173 = scalar_lea.vmem [#allocation2], 8
  %174 = vst [vmem:[%s173] sm:$0xff] %v172
  %s175 = scalar_lea.vmem [#allocation3], 16
  %v176 = vld [vmem:[%s175] sm:$0xff]
  %177 = vmatpush.msra.mxu0 %v123
  %178 = vmatpush.msra.mxu0 %v122
  %179 = vmatpush.msra.mxu0 %v121
  %180 = vmatpush.msra.mxu0 %v120
  %181 = vmatpush.msra.mxu0 %v119
  %182 = vmatpush.msra.mxu0 %v118
  %183 = vmatpush.msra.mxu0 %v117
  %184 = vmatpush.msra.mxu0 %v116
  %185 = vmatpush.msra.mxu0 %v115
  %186 = vmatpush.msra.mxu0 %v114
  %187 = vmatpush.msra.mxu0 %v113
  %188 = vmatpush.msra.mxu0 %v112
  %189 = vmatpush.msra.mxu0 %v111
  %190 = vmatpush.msra.mxu0 %v110
  %191 = vmatpush.msra.mxu0 %v109
  %192 = vmatpush.msra.mxu0 %v108
  %193 = vmatmul.f32.gmra.mxu0 %v172
  %v194 = vpop.f32.mrf.mxu0
  %v195 = vadd.f32 0.0, %v194
  %196 = vdwg.mxu0
  %v197 = vadd.f32 %v176, %v195
  %v198 = vtanh.pop %v197
  %s199 = scalar_lea.vmem [#allocation2], 16
  %200 = vst [vmem:[%s199] sm:$0xff] %v198
  %s201 = scalar_lea.vmem [#allocation3], 24
  %v202 = vld [vmem:[%s201] sm:$0xff]
  %203 = vmatpush.msra.mxu0 %v123
  %204 = vmatpush.msra.mxu0 %v122
  %205 = vmatpush.msra.mxu0 %v121
  %206 = vmatpush.msra.mxu0 %v120
  %207 = vmatpush.msra.mxu0 %v119
  %208 = vmatpush.msra.mxu0 %v118
  %209 = vmatpush.msra.mxu0 %v117
  %210 = vmatpush.msra.mxu0 %v116
  %211 = vmatpush.msra.mxu0 %v115
  %212 = vmatpush.msra.mxu0 %v114
  %213 = vmatpush.msra.mxu0 %v113
  %214 = vmatpush.msra.mxu0 %v112
  %215 = vmatpush.msra.mxu0 %v111
  %216 = vmatpush.msra.mxu0 %v110
  %217 = vmatpush.msra.mxu0 %v109
  %218 = vmatpush.msra.mxu0 %v108
  %219 = vmatmul.f32.gmra.mxu0 %v198
  %v220 = vpop.f32.mrf.mxu0
  %v221 = vadd.f32 0.0, %v220
  %222 = vdwg.mxu0
  %v223 = vadd.f32 %v202, %v221
  %v224 = vtanh.pop %v223
  %s225 = scalar_lea.vmem [#allocation2], 24
  %226 = vst [vmem:[%s225] sm:$0xff] %v224
  %s227 = scalar_lea.vmem [#allocation3], 32
  %v228 = vld [vmem:[%s227] sm:$0xff]
  %229 = vmatpush.msra.mxu0 %v123
  %230 = vmatpush.msra.mxu0 %v122
  %231 = vmatpush.msra.mxu0 %v121
  %232 = vmatpush.msra.mxu0 %v120
  %233 = vmatpush.msra.mxu0 %v119
  %234 = vmatpush.msra.mxu0 %v118
  %235 = vmatpush.msra.mxu0 %v117
  %236 = vmatpush.msra.mxu0 %v116
  %237 = vmatpush.msra.mxu0 %v115
  %238 = vmatpush.msra.mxu0 %v114
  %239 = vmatpush.msra.mxu0 %v113
  %240 = vmatpush.msra.mxu0 %v112
  %241 = vmatpush.msra.mxu0 %v111
  %242 = vmatpush.msra.mxu0 %v110
  %243 = vmatpush.msra.mxu0 %v109
  %244 = vmatpush.msra.mxu0 %v108
  %245 = vmatmul.f32.gmra.mxu0 %v224
  %v246 = vpop.f32.mrf.mxu0
  %v247 = vadd.f32 0.0, %v246
  %248 = vdwg.mxu0
  %v249 = vadd.f32 %v228, %v247
  %v250 = vtanh.pop %v249
  %s251 = scalar_lea.vmem [#allocation2], 32
  %252 = vst [vmem:[%s251] sm:$0xff] %v250
  %s253 = scalar_lea.vmem [#allocation3], 40
  %v254 = vld [vmem:[%s253] sm:$0xff]
  %255 = vmatpush.msra.mxu0 %v123
  %256 = vmatpush.msra.mxu0 %v122
  %257 = vmatpush.msra.mxu0 %v121
  %258 = vmatpush.msra.mxu0 %v120
  %259 = vmatpush.msra.mxu0 %v119
  %260 = vmatpush.msra.mxu0 %v118
  %261 = vmatpush.msra.mxu0 %v117
  %262 = vmatpush.msra.mxu0 %v116
  %263 = vmatpush.msra.mxu0 %v115
  %264 = vmatpush.msra.mxu0 %v114
  %265 = vmatpush.msra.mxu0 %v113
  %266 = vmatpush.msra.mxu0 %v112
  %267 = vmatpush.msra.mxu0 %v111
  %268 = vmatpush.msra.mxu0 %v110
  %269 = vmatpush.msra.mxu0 %v109
  %270 = vmatpush.msra.mxu0 %v108
  %271 = vmatmul.f32.gmra.mxu0 %v250
  %v272 = vpop.f32.mrf.mxu0
  %v273 = vadd.f32 0.0, %v272
  %274 = vdwg.mxu0
  %v275 = vadd.f32 %v254, %v273
  %v276 = vtanh.pop %v275
  %s277 = scalar_lea.vmem [#allocation2], 40
  %278 = vst [vmem:[%s277] sm:$0xff] %v276
  %s279 = scalar_lea.vmem [#allocation3], 48
  %v280 = vld [vmem:[%s279] sm:$0xff]
  %281 = vmatpush.msra.mxu0 %v123
  %282 = vmatpush.msra.mxu0 %v122
  %283 = vmatpush.msra.mxu0 %v121
  %284 = vmatpush.msra.mxu0 %v120
  %285 = vmatpush.msra.mxu0 %v119
  %286 = vmatpush.msra.mxu0 %v118
  %287 = vmatpush.msra.mxu0 %v117
  %288 = vmatpush.msra.mxu0 %v116
  %289 = vmatpush.msra.mxu0 %v115
  %290 = vmatpush.msra.mxu0 %v114
  %291 = vmatpush.msra.mxu0 %v113
  %292 = vmatpush.msra.mxu0 %v112
  %293 = vmatpush.msra.mxu0 %v111
  %294 = vmatpush.msra.mxu0 %v110
  %295 = vmatpush.msra.mxu0 %v109
  %296 = vmatpush.msra.mxu0 %v108
  %297 = vmatmul.f32.gmra.mxu0 %v276
  %v298 = vpop.f32.mrf.mxu0
  %v299 = vadd.f32 0.0, %v298
  %300 = vdwg.mxu0
  %v301 = vadd.f32 %v280, %v299
  %v302 = vtanh.pop %v301
  %s303 = scalar_lea.vmem [#allocation2], 48
  %304 = vst [vmem:[%s303] sm:$0xff] %v302
  %s305 = scalar_lea.vmem [#allocation3], 56
  %v306 = vld [vmem:[%s305] sm:$0xff]
  %307 = vmatpush.msra.mxu0 %v123
  %308 = vmatpush.msra.mxu0 %v122
  %309 = vmatpush.msra.mxu0 %v121
  %310 = vmatpush.msra.mxu0 %v120
  %311 = vmatpush.msra.mxu0 %v119
  %312 = vmatpush.msra.mxu0 %v118
  %313 = vmatpush.msra.mxu0 %v117
  %314 = vmatpush.msra.mxu0 %v116
  %315 = vmatpush.msra.mxu0 %v115
  %316 = vmatpush.msra.mxu0 %v114
  %317 = vmatpush.msra.mxu0 %v113
  %318 = vmatpush.msra.mxu0 %v112
  %319 = vmatpush.msra.mxu0 %v111
  %320 = vmatpush.msra.mxu0 %v110
  %321 = vmatpush.msra.mxu0 %v109
  %322 = vmatpush.msra.mxu0 %v108
  %323 = vmatmul.f32.gmra.mxu0 %v302
  %v324 = vpop.f32.mrf.mxu0
  %v325 = vadd.f32 0.0, %v324
  %326 = vdwg.mxu0
  %v327 = vadd.f32 %v306, %v325
  %v328 = vtanh.pop %v327
  %s329 = scalar_lea.vmem [#allocation2], 56
  %330 = vst [vmem:[%s329] sm:$0xff] %v328
  %331 = vst [vmem:[%s9] sm:$0xff] %v328
  %v332 = vld [vmem:[#allocation2] sm:$0xff]
  %v333 = vld [vmem:[#allocation2 + $0x8] sm:$0xff]
  %v334 = vld [vmem:[#allocation2 + $0x10] sm:$0xff]
  %v335 = vld [vmem:[#allocation2 + $0x18] sm:$0xff]
  %v336 = vld [vmem:[#allocation2 + $0x20] sm:$0xff]
  %v337 = vld [vmem:[#allocation2 + $0x28] sm:$0xff]
  %v338 = vld [vmem:[#allocation2 + $0x30] sm:$0xff]
  %v339 = vld [vmem:[#allocation2 + $0x38] sm:$0xff]
  %v340 = vld [vmem:[%s6] sm:$0xff]
  %v341 = vld [vmem:[%s6 + $0x8] sm:$0xff]
  %v342 = vld [vmem:[%s6 + $0x10] sm:$0xff]
  %v343 = vld [vmem:[%s6 + $0x18] sm:$0xff]
  %v344 = vld [vmem:[%s6 + $0x20] sm:$0xff]
  %v345 = vld [vmem:[%s6 + $0x28] sm:$0xff]
  %v346 = vld [vmem:[%s6 + $0x30] sm:$0xff]
  %v347 = vld [vmem:[%s6 + $0x38] sm:$0xff]
  %v348 = vld [vmem:[%s6 + $0x40] sm:$0xff]
  %v349 = vld [vmem:[%s6 + $0x48] sm:$0xff]
  %v350 = vld [vmem:[%s6 + $0x50] sm:$0xff]
  %v351 = vld [vmem:[%s6 + $0x58] sm:$0xff]
  %v352 = vld [vmem:[%s6 + $0x60] sm:$0xff]
  %v353 = vld [vmem:[%s6 + $0x68] sm:$0xff]
  %v354 = vld [vmem:[%s6 + $0x70] sm:$0xff]
  %v355 = vld [vmem:[%s6 + $0x78] sm:$0xff]
  %v356 = vld [vmem:[%s7] sm:$0x1]
  %v358 = vperm.slane %v356, 0
  %360 = vmatpush.msra.mxu0 %v355
  %361 = vmatpush.msra.mxu0 %v354
  %362 = vmatpush.msra.mxu0 %v353
  %363 = vmatpush.msra.mxu0 %v352
  %364 = vmatpush.msra.mxu0 %v351
  %365 = vmatpush.msra.mxu0 %v350
  %366 = vmatpush.msra.mxu0 %v349
  %367 = vmatpush.msra.mxu0 %v348
  %368 = vmatpush.msra.mxu0 %v347
  %369 = vmatpush.msra.mxu0 %v346
  %370 = vmatpush.msra.mxu0 %v345
  %371 = vmatpush.msra.mxu0 %v344
  %372 = vmatpush.msra.mxu0 %v343
  %373 = vmatpush.msra.mxu0 %v342
  %374 = vmatpush.msra.mxu0 %v341
  %375 = vmatpush.msra.mxu0 %v340
  %376 = vmatmul.f32.gmra.mxu0 %v332
  %v377 = vpop.f32.mrf.mxu0
  %v378 = vadd.f32 %v358, %v377
  %379 = vmatmul.f32.gmra.mxu0 %v333
  %v380 = vpop.f32.mrf.mxu0
  %v381 = vadd.f32 %v358, %v380
  %382 = vmatmul.f32.gmra.mxu0 %v334
  %v383 = vpop.f32.mrf.mxu0
  %v384 = vadd.f32 %v358, %v383
  %385 = vmatmul.f32.gmra.mxu0 %v335
  %v386 = vpop.f32.mrf.mxu0
  %v387 = vadd.f32 %v358, %v386
  %388 = vmatmul.f32.gmra.mxu0 %v336
  %v389 = vpop.f32.mrf.mxu0
  %v390 = vadd.f32 %v358, %v389
  %391 = vmatmul.f32.gmra.mxu0 %v337
  %v392 = vpop.f32.mrf.mxu0
  %v393 = vadd.f32 %v358, %v392
  %394 = vmatmul.f32.gmra.mxu0 %v338
  %v395 = vpop.f32.mrf.mxu0
  %v396 = vadd.f32 %v358, %v395
  %397 = vmatmul.f32.gmra.mxu0 %v339
  %v398 = vpop.f32.mrf.mxu0
  %v399 = vadd.f32 %v358, %v398
  %400 = vdwg.mxu0
  %401 = vst [vmem:[%s8] sm:$0xff] %v378
  %402 = vst [vmem:[%s8 + $0x8] sm:$0xff] %v381
  %403 = vst [vmem:[%s8 + $0x10] sm:$0xff] %v384
  %404 = vst [vmem:[%s8 + $0x18] sm:$0xff] %v387
  %405 = vst [vmem:[%s8 + $0x20] sm:$0xff] %v390
  %406 = vst [vmem:[%s8 + $0x28] sm:$0xff] %v393
  %407 = vst [vmem:[%s8 + $0x30] sm:$0xff] %v396
  %408 = vst [vmem:[%s8 + $0x38] sm:$0xff] %v399
  // Predicated region
  $region34: #{charrnn_forward.1} parent=0 // pred_check
    _
  $region35: #{charrnn_forward.1} parent=0 // pred_check_branch
    %410 = sbr.rel (0) target = $region37
  $region36: #{charrnn_forward.1} parent=0 // pred_region
    _
  $region37: #{charrnn_forward.1} parent=0 // pred_fallthru
    _
  // Predicated region
  $region38: #{charrnn_forward.1} parent=0 // pred_check
    _
  $region39: #{charrnn_forward.1} parent=0 // pred_check_branch
    %412 = sbr.rel (0) target = $region41
  $region40: #{charrnn_forward.1} parent=0 // pred_region
    _
  $region41: #{charrnn_forward.1} parent=0 // pred_fallthru
    _
  // Predicated region
  $region42: #{charrnn_forward.1} parent=0 // pred_check
    _
  $region43: #{charrnn_forward.1} parent=0 // pred_check_branch
    %414 = sbr.rel (0) target = $region45
  $region44: #{charrnn_forward.1} parent=0 // pred_region
    _
  $region45: #{charrnn_forward.1} parent=0 // pred_fallthru
    _
  // Predicated region
  $region46: #{charrnn_forward.1} parent=0 // pred_check
    _
  $region47: #{charrnn_forward.1} parent=0 // pred_check_branch
    %416 = sbr.rel (0) target = $region49
  $region48: #{charrnn_forward.1} parent=0 // pred_region
    _
  $region49: #{charrnn_forward.1} parent=0 // pred_fallthru
    _

</llo_original>
